<compile_context>
chip_gen: v5e
topology: v5e:2x2
jax: 0.10.0
libtpu: 0.0.40
codegen_flags: <defaults>
</compile_context>

<pallas_src>
import math

import jax
import jax.numpy as jnp
from jax.experimental import pallas as pl
from jax.experimental.pallas import tpu as pltpu


_VMEM_LIMIT = 32 * 1024 * 1024  # keep at the v7x-safe default scoped budget


def _round_up(x, m):
    return ((x + m - 1) // m) * m


def _row_tiling(rows, cap, align):
    """Pick (padded_rows, tile) with tile % align == 0, tile <= cap.

    Prefers >= 2 grid blocks (v7x has 2 TensorCores sharded over the parallel
    grid axis) while keeping tiles `align`-dense, then shrinks the tile to the
    per-block need to minimise padding.  Padded rows are sliced off after the
    call and are nearly free.
    """
    cap = max(align, (cap // align) * align)
    tile = min(cap, _round_up(max(1, -(-rows // 2)), align))   # aim for >= 2 blocks
    grid = -(-rows // tile)
    tile = min(cap, _round_up(-(-rows // grid), align))        # minimise padding
    return grid * tile, tile


# ---------------------------------------------------------------------------
# Pallas kernels
# ---------------------------------------------------------------------------
def _conv_pool_kernel(p_ref, w_ref, b_ref, o_ref):
    """Fused conv-as-matmul + 2x2 maxpool + bias + double tanh (transposed).

    p_ref : (4, K, tr) bf16 im2col patches; leading axis = the four positions of
            each 2x2 pool window (all four share the same (n, i, j) column order).
    w_ref : (C, K) bf16 weights, b_ref : (C, 1) f32 bias, o_ref : (C, tr) f32.

    Epilogue uses tanh monotonicity + corner-invariant bias:
        max_c tanh(w@p_c + b) == tanh(max_c(w@p_c) + b)
    so only 2 tanh evaluations and 1 bias add per pooled output.
    """
    w = w_ref[...]

    def corner(c):
        return jnp.dot(w, p_ref[c], preferred_element_type=jnp.float32)  # (C, tr)

    m = jnp.maximum(jnp.maximum(corner(0), corner(1)),
                    jnp.maximum(corner(2), corner(3)))
    o_ref[...] = jnp.tanh(jnp.tanh(m + b_ref[...])).astype(o_ref.dtype)


def _mlp_kernel(x_ref, w1_ref, b1_ref, w2_ref, b2_ref, o_ref):
    """Fused tanh -> Linear(256,128pad) -> tanh -> Linear(128pad,10); h stays in VMEM."""
    h = jnp.tanh(x_ref[...])                                               # t1
    h = jnp.tanh(jnp.dot(h, w1_ref[...], preferred_element_type=jnp.float32)
                 + b1_ref[...])                                            # t2
    o_ref[...] = (jnp.dot(h, w2_ref[...], preferred_element_type=jnp.float32)
                  + b2_ref[...]).astype(o_ref.dtype)


# ---------------------------------------------------------------------------
# pallas_call wrappers
# ---------------------------------------------------------------------------
def conv_pool_pallas(patches, w, b, *, cap_rows=2048):
    """patches:(4,K,R) bf16, w:(C,K) bf16, b:(C,1) f32 -> pooled activations (C,R) f32."""
    _, k, rows = patches.shape
    c = w.shape[0]
    rows_pad, tr = _row_tiling(rows, cap_rows, align=128)
    if rows_pad != rows:
        patches = jnp.pad(patches, ((0, 0), (0, 0), (0, rows_pad - rows)))
    out = pl.pallas_call(
        _conv_pool_kernel,
        out_shape=jax.ShapeDtypeStruct((c, rows_pad), jnp.float32),
        grid=(rows_pad // tr,),
        in_specs=[
            pl.BlockSpec((4, k, tr), lambda i: (0, 0, i)),
            pl.BlockSpec((c, k), lambda i: (0, 0)),
            pl.BlockSpec((c, 1), lambda i: (0, 0)),
        ],
        out_specs=pl.BlockSpec((c, tr), lambda i: (0, i)),
        compiler_params=pltpu.CompilerParams(
            dimension_semantics=("parallel",),
            vmem_limit_bytes=_VMEM_LIMIT),
    )(patches, w, b)
    return out[:, :rows] if rows_pad != rows else out


def mlp_pallas(x, w1, b1, w2, b2, *, cap_rows=1024):
    """x:(N,256) -> logits (N,10); both linear layers (hidden padded to 128) in one kernel."""
    n, k1 = x.shape
    h = w1.shape[1]
    c = w2.shape[1]
    rows_pad, tm = _row_tiling(n, cap_rows, align=8)
    if rows_pad != n:
        x = jnp.pad(x, ((0, rows_pad - n), (0, 0)))
    out = pl.pallas_call(
        _mlp_kernel,
        out_shape=jax.ShapeDtypeStruct((rows_pad, c), jnp.float32),
        grid=(rows_pad // tm,),
        in_specs=[
            pl.BlockSpec((tm, k1), lambda i: (i, 0)),
            pl.BlockSpec((k1, h), lambda i: (0, 0)),
            pl.BlockSpec((1, h), lambda i: (0, 0)),
            pl.BlockSpec((h, c), lambda i: (0, 0)),
            pl.BlockSpec((1, c), lambda i: (0, 0)),
        ],
        out_specs=pl.BlockSpec((tm, c), lambda i: (i, 0)),
        compiler_params=pltpu.CompilerParams(
            dimension_semantics=("parallel",),
            vmem_limit_bytes=_VMEM_LIMIT),
    )(x, w1, b1, w2, b2)
    return out[:n] if rows_pad != n else out


# ---------------------------------------------------------------------------
# JAX glue: transposed, corner-grouped im2col + forward-pass wiring
# ---------------------------------------------------------------------------
def _corner_patches_T(img, ksize):
    """img:(Cin,N,H,W) -> (4, Cin*k*k, N*PH*PW) transposed im2col patches grouped
    by the four positions of each 2x2 max-pool window.

    K-axis order is (ci, kh, kw) to match torch Conv2d weight.reshape(Cout, -1).
    Column order inside each corner block is (n, i, j) over the pooled output
    grid, identical across the 4 corners, so the kernel pools element-wise.
    """
    cin, n, hgt, wid = img.shape
    oh, ow = hgt - ksize + 1, wid - ksize + 1       # conv 'valid' output size
    ph, pw = oh // 2, ow // 2                       # pooled output size
    k = cin * ksize * ksize
    cols = []
    for ci in range(cin):
        for kh in range(ksize):
            for kw in range(ksize):
                cols.append(img[ci, :, kh:kh + oh, kw:kw + ow])   # (N, OH, OW)
    pat = jnp.stack(cols, axis=0)                   # (K, N, OH, OW)
    pat = pat.reshape(k, n, ph, 2, pw, 2)
    pat = pat.transpose(3, 5, 0, 1, 2, 4)           # (di, dj, K, N, PH, PW)
    return pat.reshape(4, k, n * ph * pw)


def digit_network_forward(x_nchw, params):
    n = x_nchw.shape[0]
    bf16 = jnp.bfloat16

    # ---- Conv2d(1,6,5) + Tanh + MaxPool2d(2) + Tanh : one fused pallas_call ----
    x_cf = x_nchw.astype(bf16).transpose(1, 0, 2, 3)          # (1, N, 28, 28)
    p1 = _corner_patches_T(x_cf, 5)                            # (4, 25, N*144) bf16
    w1 = params["conv1_w"].reshape(6, 25).astype(bf16)         # (6, 25)
    b1 = params["conv1_b"].reshape(6, 1)
    z1 = conv_pool_pallas(p1, w1, b1)                          # (6, N*144) f32
    z1 = z1.reshape(6, n, 12, 12)

    # ---- Conv2d(6,16,5,groups=2) + Tanh + MaxPool2d(2) + Tanh : one fused call ----
    # Both groups merged into a single matmul via a block-diagonal (16,150) weight.
    z1b = z1.astype(bf16)
    p2 = jnp.concatenate(
        [_corner_patches_T(z1b[3 * g:3 * g + 3], 5) for g in range(2)],
        axis=1)                                                # (4, 150, N*16) bf16
    wg0 = params["conv2_w"][:8].reshape(8, 75)
    wg1 = params["conv2_w"][8:].reshape(8, 75)
    zeros = jnp.zeros((8, 75), jnp.float32)
    w2 = jnp.concatenate(
        [jnp.concatenate([wg0, zeros], axis=1),
         jnp.concatenate([zeros, wg1], axis=1)], axis=0).astype(bf16)   # (16, 150)
    b2 = params["conv2_b"].reshape(16, 1)
    z2 = conv_pool_pallas(p2, w2, b2)                          # (16, N*16) f32

    # ---- Flatten in PyTorch NCHW order: flat[n, c*16 + i*4 + j] = z2[c, n, i*4+j] ----
    flat = z2.reshape(16, n, 16).transpose(1, 0, 2).reshape(n, 256)

    # ---- Tanh -> Linear(256,100) -> Tanh -> Linear(100,10), hidden padded to 128 ----
    W1 = jnp.zeros((256, 128), jnp.float32).at[:, :100].set(params["lin1_w"].T)
    B1 = jnp.zeros((1, 128), jnp.float32).at[:, :100].set(params["lin1_b"].reshape(1, 100))
    W2 = jnp.zeros((128, 10), jnp.float32).at[:100, :].set(params["out_w"].T)
    B2 = params["out_b"].reshape(1, 10)
    logits = mlp_pallas(flat, W1, B1, W2, B2)
    return logits


def init_params(key):
    ks = jax.random.split(key, 8)

    def uni(k, shape, fan_in):
        bound = 1.0 / math.sqrt(fan_in)
        return jax.random.uniform(k, shape, jnp.float32, -bound, bound)

    return {
        "conv1_w": uni(ks[0], (6, 1, 5, 5), 1 * 5 * 5),
        "conv1_b": uni(ks[1], (6,), 1 * 5 * 5),
        "conv2_w": uni(ks[2], (16, 3, 5, 5), 3 * 5 * 5),
        "conv2_b": uni(ks[3], (16,), 3 * 5 * 5),
        "lin1_w":  uni(ks[4], (100, 256), 256),
        "lin1_b":  uni(ks[5], (100,), 256),
        "out_w":   uni(ks[6], (10, 100), 100),
        "out_b":   uni(ks[7], (10,), 100),
    }


if __name__ == "__main__":
    key = jax.random.PRNGKey(0)
    kx, kp = jax.random.split(key)
    x = jax.random.normal(kx, (2, 1, 28, 28), jnp.float32)   # MNIST-sized input
    params = init_params(kp)

    fwd = jax.jit(digit_network_forward)
    logits = fwd(x, params)
    jax.block_until_ready(logits)
    assert logits.shape == (2, 10) and logits.dtype == jnp.float32
    assert bool(jnp.all(jnp.isfinite(logits)))
    print("KERNEL_OK")
</pallas_src>

<mosaic_0001>
module attributes {stable_mosaic.version = 11 : i64} {
  func.func @_conv_pool_kernel(%arg0: i32, %arg1: memref<4x25x256xbf16, #tpu.memory_space<vmem>>, %arg2: memref<6x25xbf16, #tpu.memory_space<vmem>>, %arg3: memref<6x1xf32, #tpu.memory_space<vmem>>, %arg4: memref<6x256xf32, #tpu.memory_space<vmem>>) attributes {dimension_semantics = [#tpu.dimension_semantics<parallel>], iteration_bounds = array<i64: 2>, scalar_prefetch = 0 : i64, scratch_operands = 0 : i64, tpu.core_type = #tpu.core_type<tc>, window_params = [{transform_indices = @transform_0, window_bounds = array<i64: 4, 25, 256>}, {pipeline_mode = #tpu.pipeline_mode<synchronous>, transform_indices = @transform_1, window_bounds = array<i64: 6, 25>}, {pipeline_mode = #tpu.pipeline_mode<synchronous>, transform_indices = @transform_2, window_bounds = array<i64: 6, 1>}, {transform_indices = @transform_3, window_bounds = array<i64: 6, 256>}]} {
    %c0 = arith.constant 0 : index
    %c0_0 = arith.constant 0 : index
    %0 = vector.load %arg2[%c0, %c0_0] : memref<6x25xbf16, #tpu.memory_space<vmem>>, vector<6x25xbf16>
    %c0_1 = arith.constant 0 : index
    %c0_2 = arith.constant 0 : index
    %c0_3 = arith.constant 0 : index
    %1 = vector.load %arg1[%c0_1, %c0_2, %c0_3] : memref<4x25x256xbf16, #tpu.memory_space<vmem>>, vector<1x25x256xbf16>
    %2 = vector.shape_cast %1 : vector<1x25x256xbf16> to vector<25x256xbf16>
    %cst = arith.constant dense<0.000000e+00> : vector<6x256xf32>
    %3 = tpu.matmul %0, %2, %cst {dimension_numbers = #tpu.dot_dimension_numbers<[1], [0], [0], [1], [0, 0, 1, 1], [], []>} : vector<6x25xbf16>, vector<25x256xbf16>, vector<6x256xf32> -> vector<6x256xf32>
    %c1 = arith.constant 1 : index
    %c0_4 = arith.constant 0 : index
    %c0_5 = arith.constant 0 : index
    %4 = vector.load %arg1[%c1, %c0_4, %c0_5] : memref<4x25x256xbf16, #tpu.memory_space<vmem>>, vector<1x25x256xbf16>
    %5 = vector.shape_cast %4 : vector<1x25x256xbf16> to vector<25x256xbf16>
    %cst_6 = arith.constant dense<0.000000e+00> : vector<6x256xf32>
    %6 = tpu.matmul %0, %5, %cst_6 {dimension_numbers = #tpu.dot_dimension_numbers<[1], [0], [0], [1], [0, 0, 1, 1], [], []>} : vector<6x25xbf16>, vector<25x256xbf16>, vector<6x256xf32> -> vector<6x256xf32>
    %7 = arith.maximumf %3, %6 : vector<6x256xf32>
    %c2 = arith.constant 2 : index
    %c0_7 = arith.constant 0 : index
    %c0_8 = arith.constant 0 : index
    %8 = vector.load %arg1[%c2, %c0_7, %c0_8] : memref<4x25x256xbf16, #tpu.memory_space<vmem>>, vector<1x25x256xbf16>
    %9 = vector.shape_cast %8 : vector<1x25x256xbf16> to vector<25x256xbf16>
    %cst_9 = arith.constant dense<0.000000e+00> : vector<6x256xf32>
    %10 = tpu.matmul %0, %9, %cst_9 {dimension_numbers = #tpu.dot_dimension_numbers<[1], [0], [0], [1], [0, 0, 1, 1], [], []>} : vector<6x25xbf16>, vector<25x256xbf16>, vector<6x256xf32> -> vector<6x256xf32>
    %c3 = arith.constant 3 : index
    %c0_10 = arith.constant 0 : index
    %c0_11 = arith.constant 0 : index
    %11 = vector.load %arg1[%c3, %c0_10, %c0_11] : memref<4x25x256xbf16, #tpu.memory_space<vmem>>, vector<1x25x256xbf16>
    %12 = vector.shape_cast %11 : vector<1x25x256xbf16> to vector<25x256xbf16>
    %cst_12 = arith.constant dense<0.000000e+00> : vector<6x256xf32>
    %13 = tpu.matmul %0, %12, %cst_12 {dimension_numbers = #tpu.dot_dimension_numbers<[1], [0], [0], [1], [0, 0, 1, 1], [], []>} : vector<6x25xbf16>, vector<25x256xbf16>, vector<6x256xf32> -> vector<6x256xf32>
    %14 = arith.maximumf %10, %13 : vector<6x256xf32>
    %15 = arith.maximumf %7, %14 : vector<6x256xf32>
    %c0_13 = arith.constant 0 : index
    %c0_14 = arith.constant 0 : index
    %16 = vector.load %arg3[%c0_13, %c0_14] : memref<6x1xf32, #tpu.memory_space<vmem>>, vector<6x1xf32>
    %17 = vector.broadcast %16 : vector<6x1xf32> to vector<6x256xf32>
    %18 = arith.addf %15, %17 : vector<6x256xf32>
    %19 = math.tanh %18 : vector<6x256xf32>
    %20 = math.tanh %19 : vector<6x256xf32>
    %c0_15 = arith.constant 0 : index
    %c0_16 = arith.constant 0 : index
    %21 = vector.load %arg4[%c0_15, %c0_16] : memref<6x256xf32, #tpu.memory_space<vmem>>, vector<6x256xf32>
    tpu.vector_store %arg4[%c0_15, %c0_16], %20 {strides = array<i32>} : memref<6x256xf32, #tpu.memory_space<vmem>>, vector<6x256xf32>,
    return
  }
  func.func @transform_0(%arg0: i32) -> (i32, i32, i32) {
    %c0_i32 = arith.constant 0 : i32
    %c0_i32_0 = arith.constant 0 : i32
    %c0_i32_1 = arith.constant 0 : i32
    return %c0_i32, %c0_i32_0, %arg0 : i32, i32, i32
  }
  func.func @transform_1(%arg0: i32) -> (i32, i32) {
    %c0_i32 = arith.constant 0 : i32
    %c0_i32_0 = arith.constant 0 : i32
    %c0_i32_1 = arith.constant 0 : i32
    return %c0_i32, %c0_i32_0 : i32, i32
  }
  func.func @transform_2(%arg0: i32) -> (i32, i32) {
    %c0_i32 = arith.constant 0 : i32
    %c0_i32_0 = arith.constant 0 : i32
    %c0_i32_1 = arith.constant 0 : i32
    return %c0_i32, %c0_i32_0 : i32, i32
  }
  func.func @transform_3(%arg0: i32) -> (i32, i32) {
    %c0_i32 = arith.constant 0 : i32
    %c0_i32_0 = arith.constant 0 : i32
    return %c0_i32, %arg0 : i32, i32
  }
}

module attributes {stable_mosaic.version = 11 : i64} {
  func.func @_mlp_kernel(%arg0: i32, %arg1: memref<8x256xf32, #tpu.memory_space<vmem>>, %arg2: memref<256x128xf32, #tpu.memory_space<vmem>>, %arg3: memref<1x128xf32, #tpu.memory_space<vmem>>, %arg4: memref<128x10xf32, #tpu.memory_space<vmem>>, %arg5: memref<1x10xf32, #tpu.memory_space<vmem>>, %arg6: memref<8x10xf32, #tpu.memory_space<vmem>>) attributes {dimension_semantics = [#tpu.dimension_semantics<parallel>], iteration_bounds = array<i64: 1>, scalar_prefetch = 0 : i64, scratch_operands = 0 : i64, tpu.core_type = #tpu.core_type<tc>, window_params = [{transform_indices = @transform_0, window_bounds = array<i64: 8, 256>}, {pipeline_mode = #tpu.pipeline_mode<synchronous>, transform_indices = @transform_1, window_bounds = array<i64: 256, 128>}, {pipeline_mode = #tpu.pipeline_mode<synchronous>, transform_indices = @transform_2, window_bounds = array<i64: 1, 128>}, {pipeline_mode = #tpu.pipeline_mode<synchronous>, transform_indices = @transform_3, window_bounds = array<i64: 128, 10>}, {pipeline_mode = #tpu.pipeline_mode<synchronous>, transform_indices = @transform_4, window_bounds = array<i64: 1, 10>}, {transform_indices = @transform_5, window_bounds = array<i64: 8, 10>}]} {
    %c0 = arith.constant 0 : index
    %c0_0 = arith.constant 0 : index
    %0 = vector.load %arg1[%c0, %c0_0] : memref<8x256xf32, #tpu.memory_space<vmem>>, vector<8x256xf32>
    %1 = math.tanh %0 : vector<8x256xf32>
    %c0_1 = arith.constant 0 : index
    %c0_2 = arith.constant 0 : index
    %2 = vector.load %arg2[%c0_1, %c0_2] : memref<256x128xf32, #tpu.memory_space<vmem>>, vector<256x128xf32>
    %cst = arith.constant dense<0.000000e+00> : vector<8x128xf32>
    %3 = tpu.matmul %1, %2, %cst {dimension_numbers = #tpu.dot_dimension_numbers<[1], [0], [0], [1], [0, 0, 1, 1], [], []>} : vector<8x256xf32>, vector<256x128xf32>, vector<8x128xf32> -> vector<8x128xf32>
    %c0_3 = arith.constant 0 : index
    %c0_4 = arith.constant 0 : index
    %4 = vector.load %arg3[%c0_3, %c0_4] : memref<1x128xf32, #tpu.memory_space<vmem>>, vector<1x128xf32>
    %5 = vector.broadcast %4 : vector<1x128xf32> to vector<8x128xf32>
    %6 = arith.addf %3, %5 : vector<8x128xf32>
    %7 = math.tanh %6 : vector<8x128xf32>
    %c0_5 = arith.constant 0 : index
    %c0_6 = arith.constant 0 : index
    %8 = vector.load %arg4[%c0_5, %c0_6] : memref<128x10xf32, #tpu.memory_space<vmem>>, vector<128x10xf32>
    %cst_7 = arith.constant dense<0.000000e+00> : vector<8x10xf32>
    %9 = tpu.matmul %7, %8, %cst_7 {dimension_numbers = #tpu.dot_dimension_numbers<[1], [0], [0], [1], [0, 0, 1, 1], [], []>} : vector<8x128xf32>, vector<128x10xf32>, vector<8x10xf32> -> vector<8x10xf32>
    %c0_8 = arith.constant 0 : index
    %c0_9 = arith.constant 0 : index
    %10 = vector.load %arg5[%c0_8, %c0_9] : memref<1x10xf32, #tpu.memory_space<vmem>>, vector<1x10xf32>
    %11 = vector.broadcast %10 : vector<1x10xf32> to vector<8x10xf32>
    %12 = arith.addf %9, %11 : vector<8x10xf32>
    %c0_10 = arith.constant 0 : index
    %c0_11 = arith.constant 0 : index
    %13 = vector.load %arg6[%c0_10, %c0_11] : memref<8x10xf32, #tpu.memory_space<vmem>>, vector<8x10xf32>
    tpu.vector_store %arg6[%c0_10, %c0_11], %12 {strides = array<i32>} : memref<8x10xf32, #tpu.memory_space<vmem>>, vector<8x10xf32>,
    return
  }
  func.func @transform_0(%arg0: i32) -> (i32, i32) {
    %c0_i32 = arith.constant 0 : i32
    %c0_i32_0 = arith.constant 0 : i32
    return %arg0, %c0_i32 : i32, i32
  }
  func.func @transform_1(%arg0: i32) -> (i32, i32) {
    %c0_i32 = arith.constant 0 : i32
    %c0_i32_0 = arith.constant 0 : i32
    %c0_i32_1 = arith.constant 0 : i32
    return %c0_i32, %c0_i32_0 : i32, i32
  }
  func.func @transform_2(%arg0: i32) -> (i32, i32) {
    %c0_i32 = arith.constant 0 : i32
    %c0_i32_0 = arith.constant 0 : i32
    %c0_i32_1 = arith.constant 0 : i32
    return %c0_i32, %c0_i32_0 : i32, i32
  }
  func.func @transform_3(%arg0: i32) -> (i32, i32) {
    %c0_i32 = arith.constant 0 : i32
    %c0_i32_0 = arith.constant 0 : i32
    %c0_i32_1 = arith.constant 0 : i32
    return %c0_i32, %c0_i32_0 : i32, i32
  }
  func.func @transform_4(%arg0: i32) -> (i32, i32) {
    %c0_i32 = arith.constant 0 : i32
    %c0_i32_0 = arith.constant 0 : i32
    %c0_i32_1 = arith.constant 0 : i32
    return %c0_i32, %c0_i32_0 : i32, i32
  }
  func.func @transform_5(%arg0: i32) -> (i32, i32) {
    %c0_i32 = arith.constant 0 : i32
    %c0_i32_0 = arith.constant 0 : i32
    return %arg0, %c0_i32 : i32, i32
  }
}

module attributes {stable_mosaic.version = 11 : i64} {
  func.func @_conv_pool_kernel(%arg0: i32, %arg1: memref<4x150x128xbf16, #tpu.memory_space<vmem>>, %arg2: memref<16x150xbf16, #tpu.memory_space<vmem>>, %arg3: memref<16x1xf32, #tpu.memory_space<vmem>>, %arg4: memref<16x128xf32, #tpu.memory_space<vmem>>) attributes {dimension_semantics = [#tpu.dimension_semantics<parallel>], iteration_bounds = array<i64: 1>, scalar_prefetch = 0 : i64, scratch_operands = 0 : i64, tpu.core_type = #tpu.core_type<tc>, window_params = [{transform_indices = @transform_0, window_bounds = array<i64: 4, 150, 128>}, {pipeline_mode = #tpu.pipeline_mode<synchronous>, transform_indices = @transform_1, window_bounds = array<i64: 16, 150>}, {pipeline_mode = #tpu.pipeline_mode<synchronous>, transform_indices = @transform_2, window_bounds = array<i64: 16, 1>}, {transform_indices = @transform_3, window_bounds = array<i64: 16, 128>}]} {
    %c0 = arith.constant 0 : index
    %c0_0 = arith.constant 0 : index
    %0 = vector.load %arg2[%c0, %c0_0] : memref<16x150xbf16, #tpu.memory_space<vmem>>, vector<16x150xbf16>
    %c0_1 = arith.constant 0 : index
    %c0_2 = arith.constant 0 : index
    %c0_3 = arith.constant 0 : index
    %1 = vector.load %arg1[%c0_1, %c0_2, %c0_3] : memref<4x150x128xbf16, #tpu.memory_space<vmem>>, vector<1x150x128xbf16>
    %2 = vector.shape_cast %1 : vector<1x150x128xbf16> to vector<150x128xbf16>
    %cst = arith.constant dense<0.000000e+00> : vector<16x128xf32>
    %3 = tpu.matmul %0, %2, %cst {dimension_numbers = #tpu.dot_dimension_numbers<[1], [0], [0], [1], [0, 0, 1, 1], [], []>} : vector<16x150xbf16>, vector<150x128xbf16>, vector<16x128xf32> -> vector<16x128xf32>
    %c1 = arith.constant 1 : index
    %c0_4 = arith.constant 0 : index
    %c0_5 = arith.constant 0 : index
    %4 = vector.load %arg1[%c1, %c0_4, %c0_5] : memref<4x150x128xbf16, #tpu.memory_space<vmem>>, vector<1x150x128xbf16>
    %5 = vector.shape_cast %4 : vector<1x150x128xbf16> to vector<150x128xbf16>
    %cst_6 = arith.constant dense<0.000000e+00> : vector<16x128xf32>
    %6 = tpu.matmul %0, %5, %cst_6 {dimension_numbers = #tpu.dot_dimension_numbers<[1], [0], [0], [1], [0, 0, 1, 1], [], []>} : vector<16x150xbf16>, vector<150x128xbf16>, vector<16x128xf32> -> vector<16x128xf32>
    %7 = arith.maximumf %3, %6 : vector<16x128xf32>
    %c2 = arith.constant 2 : index
    %c0_7 = arith.constant 0 : index
    %c0_8 = arith.constant 0 : index
    %8 = vector.load %arg1[%c2, %c0_7, %c0_8] : memref<4x150x128xbf16, #tpu.memory_space<vmem>>, vector<1x150x128xbf16>
    %9 = vector.shape_cast %8 : vector<1x150x128xbf16> to vector<150x128xbf16>
    %cst_9 = arith.constant dense<0.000000e+00> : vector<16x128xf32>
    %10 = tpu.matmul %0, %9, %cst_9 {dimension_numbers = #tpu.dot_dimension_numbers<[1], [0], [0], [1], [0, 0, 1, 1], [], []>} : vector<16x150xbf16>, vector<150x128xbf16>, vector<16x128xf32> -> vector<16x128xf32>
    %c3 = arith.constant 3 : index
    %c0_10 = arith.constant 0 : index
    %c0_11 = arith.constant 0 : index
    %11 = vector.load %arg1[%c3, %c0_10, %c0_11] : memref<4x150x128xbf16, #tpu.memory_space<vmem>>, vector<1x150x128xbf16>
    %12 = vector.shape_cast %11 : vector<1x150x128xbf16> to vector<150x128xbf16>
    %cst_12 = arith.constant dense<0.000000e+00> : vector<16x128xf32>
    %13 = tpu.matmul %0, %12, %cst_12 {dimension_numbers = #tpu.dot_dimension_numbers<[1], [0], [0], [1], [0, 0, 1, 1], [], []>} : vector<16x150xbf16>, vector<150x128xbf16>, vector<16x128xf32> -> vector<16x128xf32>
    %14 = arith.maximumf %10, %13 : vector<16x128xf32>
    %15 = arith.maximumf %7, %14 : vector<16x128xf32>
    %c0_13 = arith.constant 0 : index
    %c0_14 = arith.constant 0 : index
    %16 = vector.load %arg3[%c0_13, %c0_14] : memref<16x1xf32, #tpu.memory_space<vmem>>, vector<16x1xf32>
    %17 = vector.broadcast %16 : vector<16x1xf32> to vector<16x128xf32>
    %18 = arith.addf %15, %17 : vector<16x128xf32>
    %19 = math.tanh %18 : vector<16x128xf32>
    %20 = math.tanh %19 : vector<16x128xf32>
    %c0_15 = arith.constant 0 : index
    %c0_16 = arith.constant 0 : index
    %21 = vector.load %arg4[%c0_15, %c0_16] : memref<16x128xf32, #tpu.memory_space<vmem>>, vector<16x128xf32>
    tpu.vector_store %arg4[%c0_15, %c0_16], %20 {strides = array<i32>} : memref<16x128xf32, #tpu.memory_space<vmem>>, vector<16x128xf32>,
    return
  }
  func.func @transform_0(%arg0: i32) -> (i32, i32, i32) {
    %c0_i32 = arith.constant 0 : i32
    %c0_i32_0 = arith.constant 0 : i32
    %c0_i32_1 = arith.constant 0 : i32
    return %c0_i32, %c0_i32_0, %arg0 : i32, i32, i32
  }
  func.func @transform_1(%arg0: i32) -> (i32, i32) {
    %c0_i32 = arith.constant 0 : i32
    %c0_i32_0 = arith.constant 0 : i32
    %c0_i32_1 = arith.constant 0 : i32
    return %c0_i32, %c0_i32_0 : i32, i32
  }
  func.func @transform_2(%arg0: i32) -> (i32, i32) {
    %c0_i32 = arith.constant 0 : i32
    %c0_i32_0 = arith.constant 0 : i32
    %c0_i32_1 = arith.constant 0 : i32
    return %c0_i32, %c0_i32_0 : i32, i32
  }
  func.func @transform_3(%arg0: i32) -> (i32, i32) {
    %c0_i32 = arith.constant 0 : i32
    %c0_i32_0 = arith.constant 0 : i32
    return %c0_i32, %arg0 : i32, i32
  }
}

</mosaic_0001>

<llo_original>
// kernel: digit_network_forward.3
$region0: #{digit_network_forward.3}
  #allocation0 [shape = 'u32[]', space=smem, size = 0x4, offset = 0x4, fixed_abs, tag = 'smem constant byte address 0x4 - core index']
  #allocation1 [shape = 'u32[72,128]{1,0:T(1,128)}', space=vmem, size = 0x9000, scoped, tag = 'internal scratch']
  %s0 = inlined_call_operand.vmem [shape: bf16[4,25,512], index: 0, kind: input, shape index: {}]
  %s1 = inlined_call_operand.vmem [shape: bf16[6,25], index: 1, kind: input, shape index: {}]
  %s2 = inlined_call_operand.vmem [shape: f32[6,1], index: 2, kind: input, shape index: {}]
  %s3 = inlined_call_operand.vmem [shape: f32[6,512], index: 3, kind: output, shape index: {}]
  %s4 = sld [smem:[#allocation0]]
  $region83: #{digit_network_forward.3} parent=0
    _
  %s6 = ssub.s32 1, %s4
  %s7 = scalar_select 0, %s6, %s4
  $region1: #{digit_network_forward.3} parent=0
    #allocation2 [shape = 'u8[131072]{0}', space=vmem, size = 0x20000, scoped, tag = 'input window, operand 0']
    loop: start=0, step=1, limit=4
    $region2: #{digit_network_forward.3} parent=1 // loop_pre_header
      _
    $region3: #{digit_network_forward.3} parent=1 // loop_header
      %s9 = sphi 0, %s13
      %p10 = scmp.ge.s32.totalorder %s9, 4
      %s19 = sphi 0, %s21
      %s22 = sphi 0, %s19
      %s23 = sphi 0, %s22
      %s39 = sphi 0, %s23
      %s43 = sphi 0, %s43
      %s45 = sphi 0, %s43
      %s46 = sphi 0, %s45
      %s60 = sphi 0, %s46
      %s64 = sphi 0, %s64
      %s66 = sphi 0, %s64
      %s67 = sphi 0, %s66
      %s81 = sphi 0, %s67
      %s87 = sphi 0, %s89
      %s90 = sphi 0, %s87
      %s91 = sphi 0, %s90
      %s107 = sphi 0, %s91
    $region4: #{digit_network_forward.3} parent=1 // loop_header_branch
      %12 = sbr.rel (%p10) target = $region8
    $region5: #{digit_network_forward.3} parent=1 // loop_body
      %s14 = ssub.s32 %s9, 1
      %s15 = ssub.s32 %s9, 2
      %s16 = sadd.s32 %s9, 1
      %s17 = ssub.s32 %s9, %s16
      %p18 = scmp.eq.s32.totalorder %s17, 0
      %s20 = sadd.s32 %s19, 1
      %s21 = scalar_select %p18, %s19, %s20
      %p24 = pneg %p18
      %p25 = scmp.eq.s32.totalorder %s9, 1
      %p26 = por %p24, %p25
      %p27 = scmp.ne.s32.totalorder %s19, %s22
      %p28 = scmp.eq.s32.totalorder %s9, 0
      %p29 = por %p27, %p28
      %p30 = scmp.ne.s32.totalorder %s19, %s22
      %p31 = scmp.eq.s32.totalorder %s14, 1
      %p32 = por %p30, %p31
      %p33 = scmp.ne.s32.totalorder %s22, %s23
      %p34 = scmp.eq.s32.totalorder %s14, 0
      %p35 = por %p33, %p34
      %p36 = scmp.ne.s32.totalorder %s22, %s23
      %p37 = scmp.eq.s32.totalorder %s15, 1
      %p38 = por %p36, %p37
      %p40 = scmp.ne.s32.totalorder %s23, %s39
      %p41 = scmp.eq.s32.totalorder %s15, 0
      %p42 = por %p40, %p41
      %s44 = sadd.s32 %s43, 1
      %p47 = scmp.eq.s32.totalorder %s9, 1
      %p48 = scmp.ne.s32.totalorder %s43, %s45
      %p49 = scmp.eq.s32.totalorder %s9, 0
      %p50 = por %p48, %p49
      %p51 = scmp.ne.s32.totalorder %s43, %s45
      %p52 = scmp.eq.s32.totalorder %s14, 1
      %p53 = por %p51, %p52
      %p54 = scmp.ne.s32.totalorder %s45, %s46
      %p55 = scmp.eq.s32.totalorder %s14, 0
      %p56 = por %p54, %p55
      %p57 = scmp.ne.s32.totalorder %s45, %s46
      %p58 = scmp.eq.s32.totalorder %s15, 1
      %p59 = por %p57, %p58
      %p61 = scmp.ne.s32.totalorder %s46, %s60
      %p62 = scmp.eq.s32.totalorder %s15, 0
      %p63 = por %p61, %p62
      %s65 = sadd.s32 %s64, 1
      %p68 = scmp.eq.s32.totalorder %s9, 1
      %p69 = scmp.ne.s32.totalorder %s64, %s66
      %p70 = scmp.eq.s32.totalorder %s9, 0
      %p71 = por %p69, %p70
      %p72 = scmp.ne.s32.totalorder %s64, %s66
      %p73 = scmp.eq.s32.totalorder %s14, 1
      %p74 = por %p72, %p73
      %p75 = scmp.ne.s32.totalorder %s66, %s67
      %p76 = scmp.eq.s32.totalorder %s14, 0
      %p77 = por %p75, %p76
      %p78 = scmp.ne.s32.totalorder %s66, %s67
      %p79 = scmp.eq.s32.totalorder %s15, 1
      %p80 = por %p78, %p79
      %p82 = scmp.ne.s32.totalorder %s67, %s81
      %p83 = scmp.eq.s32.totalorder %s15, 0
      %p84 = por %p82, %p83
      %s85 = ssub.s32 %s9, %s16
      %p86 = scmp.eq.s32.totalorder %s85, 0
      %s88 = sadd.s32 %s87, 1
      %s89 = scalar_select %p86, %s87, %s88
      %p92 = pneg %p86
      %p93 = scmp.eq.s32.totalorder %s9, 1
      %p94 = por %p92, %p93
      %p95 = scmp.ne.s32.totalorder %s87, %s90
      %p96 = scmp.eq.s32.totalorder %s9, 0
      %p97 = por %p95, %p96
      %p98 = scmp.ne.s32.totalorder %s87, %s90
      %p99 = scmp.eq.s32.totalorder %s14, 1
      %p100 = por %p98, %p99
      %p101 = scmp.ne.s32.totalorder %s90, %s91
      %p102 = scmp.eq.s32.totalorder %s14, 0
      %p103 = por %p101, %p102
      %p104 = scmp.ne.s32.totalorder %s90, %s91
      %p105 = scmp.eq.s32.totalorder %s15, 1
      %p106 = por %p104, %p105
      %p108 = scmp.ne.s32.totalorder %s91, %s107
      %p109 = scmp.eq.s32.totalorder %s15, 0
      %p110 = por %p108, %p109
      %p111 = scmp.le.s32.totalorder 1, %s9
      %p112 = scmp.lt.s32.totalorder %s9, 3
      %p113 = pnand %p111, %p112
      %p114 = pneg %p113
      // Predicated region
      $region9: #{digit_network_forward.3} parent=5 // pred_check
        _
      $region10: #{digit_network_forward.3} parent=5 // pred_check_branch
        %116 = sbr.rel (%p113) target = $region12
      $region11: #{digit_network_forward.3} parent=5 // pred_region
        %s117 = ssub.s32 %s9, 1
        // Predicated region
        $region13: #{digit_network_forward.3} parent=11 // pred_check
          %p118 = pneg %p56
        $region14: #{digit_network_forward.3} parent=11 // pred_check_branch
          %120 = sbr.rel (%p118) target = $region16
        $region15: #{digit_network_forward.3} parent=11 // pred_region
          _
        $region16: #{digit_network_forward.3} parent=11 // pred_fallthru
          _
        // Predicated region
        $region17: #{digit_network_forward.3} parent=11 // pred_check
          %p121 = pneg %p77
        $region18: #{digit_network_forward.3} parent=11 // pred_check_branch
          %123 = sbr.rel (%p121) target = $region20
        $region19: #{digit_network_forward.3} parent=11 // pred_region
          _
        $region20: #{digit_network_forward.3} parent=11 // pred_fallthru
          _
      $region12: #{digit_network_forward.3} parent=5 // pred_fallthru
        _
      %p124 = scmp.lt.s32.totalorder %s9, 2
      // Predicated region
      $region21: #{digit_network_forward.3} parent=5 // pred_check
        %p125 = pneg %p124
      $region22: #{digit_network_forward.3} parent=5 // pred_check_branch
        %127 = sbr.rel (%p125) target = $region24
      $region23: #{digit_network_forward.3} parent=5 // pred_region
        // Predicated region
        $region25: #{digit_network_forward.3} parent=23 // pred_check
          %p128 = pneg %p29
        $region26: #{digit_network_forward.3} parent=23 // pred_check_branch
          %130 = sbr.rel (%p128) target = $region28
        $region27: #{digit_network_forward.3} parent=23 // pred_region
          %s131 = sand.u32 %s19, 1
          %s132 = sand.u32 %s19, 1
          %s133 = smul.addr %s132, 128
          %s134 = scalar_lea.vmem [#allocation2], %s133
          %s135 = smul.u32 2, %s9
          %s136 = smul.addr %s135, 4
          %s137 = scalar_lea.vmem %s0, %s136
          // Predicated region
          $region29: #{digit_network_forward.3} parent=27 // pred_check
            _
          $region30: #{digit_network_forward.3} parent=27 // pred_check_branch
            %139 = sbr.rel (0) target = $region32
          $region31: #{digit_network_forward.3} parent=27 // pred_region
            // Predicated region
            $region33: #{digit_network_forward.3} parent=31 // pred_check
              _
            $region34: #{digit_network_forward.3} parent=31 // pred_check_branch
              %141 = sbr.rel (0) target = $region36
            $region35: #{digit_network_forward.3} parent=31 // pred_region
              // Predicated region
              $region48: #{digit_network_forward.3} parent=35 // pred_check
                _
              $region49: #{digit_network_forward.3} parent=35 // pred_check_branch
                %187 = sbr.rel (0) target = $region51
              $region50: #{digit_network_forward.3} parent=35 // pred_region
                loop: start=0, step=1, limit=1
                $region52: #{digit_network_forward.3} parent=50 // loop_pre_header
                  _
                $region53: #{digit_network_forward.3} parent=50 // loop_header
                  %s189 = sphi 0, %s193
                  %p190 = scmp.ge.s32.totalorder %s189, 1
                  %s194 = sphi %s137, %s137
                  %s195 = sphi %s134, %s134
                $region54: #{digit_network_forward.3} parent=50 // loop_header_branch
                  %192 = sbr.rel (%p190) target = $region58
                $region55: #{digit_network_forward.3} parent=50 // loop_body
                  %v196 = vld [vmem:[%s194] sm:$0xff]
                  %197 = vst [vmem:[%s195] sm:$0xff] %v196
                  %v198 = vld [vmem:[%s194 + $0x10] sm:$0xff]
                  %199 = vst [vmem:[%s195 + $0x8] sm:$0xff] %v198
                  %v200 = vld [vmem:[%s194 + $0x20] sm:$0xff]
                  %201 = vst [vmem:[%s195 + $0x10] sm:$0xff] %v200
                  %v202 = vld [vmem:[%s194 + $0x30] sm:$0xff]
                  %203 = vst [vmem:[%s195 + $0x18] sm:$0xff] %v202
                  %v204 = vld [vmem:[%s194 + $0x40] sm:$0xff]
                  %205 = vst [vmem:[%s195 + $0x20] sm:$0xff] %v204
                  %v206 = vld [vmem:[%s194 + $0x50] sm:$0xff]
                  %207 = vst [vmem:[%s195 + $0x28] sm:$0xff] %v206
                  %v208 = vld [vmem:[%s194 + $0x60] sm:$0xff]
                  %209 = vst [vmem:[%s195 + $0x30] sm:$0xff] %v208
                  %v210 = vld [vmem:[%s194 + $0x70] sm:$0xff]
                  %211 = vst [vmem:[%s195 + $0x38] sm:$0xff] %v210
                  %v212 = vld [vmem:[%s194 + $0x80] sm:$0xff]
                  %213 = vst [vmem:[%s195 + $0x40] sm:$0xff] %v212
                  %v214 = vld [vmem:[%s194 + $0x90] sm:$0xff]
                  %215 = vst [vmem:[%s195 + $0x48] sm:$0xff] %v214
                  %v216 = vld [vmem:[%s194 + $0xa0] sm:$0xff]
                  %217 = vst [vmem:[%s195 + $0x50] sm:$0xff] %v216
                  %v218 = vld [vmem:[%s194 + $0xb0] sm:$0xff]
                  %219 = vst [vmem:[%s195 + $0x58] sm:$0xff] %v218
                  %v220 = vld [vmem:[%s194 + $0xc0] sm:$0xff]
                  %221 = vst [vmem:[%s195 + $0x60] sm:$0xff] %v220
                  %v222 = vld [vmem:[%s194 + $0xd0] sm:$0xff]
                  %223 = vst [vmem:[%s195 + $0x68] sm:$0xff] %v222
                  %v224 = vld [vmem:[%s194 + $0xe0] sm:$0xff]
                  %225 = vst [vmem:[%s195 + $0x70] sm:$0xff] %v224
                  %v226 = vld [vmem:[%s194 + $0xf0] sm:$0xff]
                  %227 = vst [vmem:[%s195 + $0x78] sm:$0xff] %v226
                $region56: #{digit_network_forward.3} parent=50 // loop_footer
                  %s193 = sadd.s32 1, %s189
                $region57: #{digit_network_forward.3} parent=50 // loop_footer_branch
                  %188 = sbr.rel target = $region53
                $region58: #{digit_network_forward.3} parent=50 // loop_exit
                  _
              $region51: #{digit_network_forward.3} parent=35 // pred_fallthru
                _
              // Predicated region
              $region59: #{digit_network_forward.3} parent=35 // pred_check
                _
              $region60: #{digit_network_forward.3} parent=35 // pred_check_branch
                %229 = sbr.rel target = $region62
              $region61: #{digit_network_forward.3} parent=35 // pred_region
                _
              $region62: #{digit_network_forward.3} parent=35 // pred_fallthru
                _
            $region36: #{digit_network_forward.3} parent=31 // pred_fallthru
              _
            // Predicated region
            $region37: #{digit_network_forward.3} parent=31 // pred_check
              _
            $region38: #{digit_network_forward.3} parent=31 // pred_check_branch
              %143 = sbr.rel target = $region40
            $region39: #{digit_network_forward.3} parent=31 // pred_region
              %s145 = ssub.s32 256, 1
              loop: start=0, step=1, limit=1
              $region41: #{digit_network_forward.3} parent=39 // loop_pre_header
                _
              $region42: #{digit_network_forward.3} parent=39 // loop_header
                %s147 = sphi 0, %s151
                %p148 = scmp.ge.s32.totalorder %s147, 1
                %s152 = sphi %s137, %s137
                %s153 = sphi %s134, %s134
              $region43: #{digit_network_forward.3} parent=39 // loop_header_branch
                %150 = sbr.rel (%p148) target = $region47
              $region44: #{digit_network_forward.3} parent=39 // loop_body
                %v154 = vld [vmem:[%s152] sm:%s145]
                %155 = vst [vmem:[%s153] sm:%s145] %v154
                %v156 = vld [vmem:[%s152 + $0x10] sm:%s145]
                %157 = vst [vmem:[%s153 + $0x8] sm:%s145] %v156
                %v158 = vld [vmem:[%s152 + $0x20] sm:%s145]
                %159 = vst [vmem:[%s153 + $0x10] sm:%s145] %v158
                %v160 = vld [vmem:[%s152 + $0x30] sm:%s145]
                %161 = vst [vmem:[%s153 + $0x18] sm:%s145] %v160
                %v162 = vld [vmem:[%s152 + $0x40] sm:%s145]
                %163 = vst [vmem:[%s153 + $0x20] sm:%s145] %v162
                %v164 = vld [vmem:[%s152 + $0x50] sm:%s145]
                %165 = vst [vmem:[%s153 + $0x28] sm:%s145] %v164
                %v166 = vld [vmem:[%s152 + $0x60] sm:%s145]
                %167 = vst [vmem:[%s153 + $0x30] sm:%s145] %v166
                %v168 = vld [vmem:[%s152 + $0x70] sm:%s145]
                %169 = vst [vmem:[%s153 + $0x38] sm:%s145] %v168
                %v170 = vld [vmem:[%s152 + $0x80] sm:%s145]
                %171 = vst [vmem:[%s153 + $0x40] sm:%s145] %v170
                %v172 = vld [vmem:[%s152 + $0x90] sm:%s145]
                %173 = vst [vmem:[%s153 + $0x48] sm:%s145] %v172
                %v174 = vld [vmem:[%s152 + $0xa0] sm:%s145]
                %175 = vst [vmem:[%s153 + $0x50] sm:%s145] %v174
                %v176 = vld [vmem:[%s152 + $0xb0] sm:%s145]
                %177 = vst [vmem:[%s153 + $0x58] sm:%s145] %v176
                %v178 = vld [vmem:[%s152 + $0xc0] sm:%s145]
                %179 = vst [vmem:[%s153 + $0x60] sm:%s145] %v178
                %v180 = vld [vmem:[%s152 + $0xd0] sm:%s145]
                %181 = vst [vmem:[%s153 + $0x68] sm:%s145] %v180
                %v182 = vld [vmem:[%s152 + $0xe0] sm:%s145]
                %183 = vst [vmem:[%s153 + $0x70] sm:%s145] %v182
                %v184 = vld [vmem:[%s152 + $0xf0] sm:%s145]
                %185 = vst [vmem:[%s153 + $0x78] sm:%s145] %v184
              $region45: #{digit_network_forward.3} parent=39 // loop_footer
                %s151 = sadd.s32 1, %s147
              $region46: #{digit_network_forward.3} parent=39 // loop_footer_branch
                %146 = sbr.rel target = $region42
              $region47: #{digit_network_forward.3} parent=39 // loop_exit
                _
            $region40: #{digit_network_forward.3} parent=31 // pred_fallthru
              _
          $region32: #{digit_network_forward.3} parent=27 // pred_fallthru
            _
          %230 = vnop
        $region28: #{digit_network_forward.3} parent=23 // pred_fallthru
          _
      $region24: #{digit_network_forward.3} parent=5 // pred_fallthru
        _
      %p231 = scmp.le.s32.totalorder 1, %s9
      %p232 = scmp.lt.s32.totalorder %s9, 3
      %p233 = pnand %p231, %p232
      %p234 = pneg %p233
      // Predicated region
      $region63: #{digit_network_forward.3} parent=5 // pred_check
        _
      $region64: #{digit_network_forward.3} parent=5 // pred_check_branch
        %236 = sbr.rel (%p233) target = $region66
      $region65: #{digit_network_forward.3} parent=5 // pred_region
        %s237 = ssub.s32 %s9, 1
        %s238 = sand.u32 %s22, 1
        %s239 = sand.u32 %s22, 1
        %s240 = smul.addr %s239, 128
        %s241 = scalar_lea.vmem [#allocation2], %s240
        // Predicated region
        $region67: #{digit_network_forward.3} parent=65 // pred_check
          %p242 = pneg %p35
        $region68: #{digit_network_forward.3} parent=65 // pred_check_branch
          %244 = sbr.rel (%p242) target = $region70
        $region69: #{digit_network_forward.3} parent=65 // pred_region
          _
        $region70: #{digit_network_forward.3} parent=65 // pred_fallthru
          _
        %s245 = sand.u32 %s22, 1
        %s246 = sand.u32 %s22, 1
        %s247 = smul.addr %s246, 128
        %s248 = scalar_lea.vmem [#allocation2], %s247
        %p249 = pneg %p35
        %p250 = pneg %p32
        %p251 = pneg %p56
        %p252 = pneg %p53
        %p253 = pneg %p77
        %p254 = pneg %p74
        %p255 = pneg %p103
        %p256 = pneg %p100
        %s257 = smul.u32 2, %s14
        %p258 = scmp.lt.s32.totalorder %s257, 3
        %s259 = scalar_select %p258, %s257, 3
        %s260 = smul.addr %s259, 8
        %s261 = scalar_lea.vmem %s3, %s260
        %s262 = smul.u32 2, %s14
        %s263 = smul.u32 2, %s14
        %p264 = scmp.lt.s32.totalorder %s263, 3
        %s265 = scalar_select %p264, %s263, 3
        %s266 = smul.addr %s265, 8
        %s267 = scalar_lea.vmem %s3, %s266
        %s268 = smul.u32 2, %s14
        %v270 = vld [vmem:[%s1] sm:$0x7]
        %v271 = vld [vmem:[%s241] sm:$0xff]
        %v272 = vld [vmem:[%s241 + $0x8] sm:$0xff]
        %v273 = vld [vmem:[%s241 + $0x10] sm:$0xff]
        %v274 = vld [vmem:[%s241 + $0x18] sm:$0x11]
        %v279 = vunpack.c.l.b16 %v271
        %v280 = vunpack.c.h.b16 %v271
        %v281 = vunpack.c.l.b16 %v272
        %v282 = vunpack.c.h.b16 %v272
        %v283 = vunpack.c.l.b16 %v273
        %v284 = vunpack.c.h.b16 %v273
        %v285 = vunpack.c.l.b16 %v274
        %v286 = vunpack.c.h.b16 %v274
        %v287 = vpack.c.b16 %v281, %v279
        %v288 = vpack.c.b16 %v282, %v280
        %v289 = vpack.c.b16 %v285, %v283
        %v290 = vpack.c.b16 %v286, %v284
        %vm293 = vcmask 203776
        %v295 = vsel %vm293, %v270, 0
        %vm297 = vcmask 1043456
        %vm298 = vcmask 1044480
        %v299 = vsel %vm297, 4294967295, 65535
        %v300 = vsel %vm298, %v299, 0
        %v302 = vand.u32 %v289, %v300
        %v305 = vand.u32 %v290, %v300
        %307 = vmatpush.bf16.msra.mxu0 0
        %308 = vmatpush.bf16.msra.mxu0 0
        %309 = vmatpush.bf16.msra.mxu0 0
        %310 = vmatpush.bf16.msra.mxu0 0
        %311 = vmatpush.bf16.msra.mxu0 0
        %312 = vmatpush.bf16.msra.mxu0 0
        %313 = vmatpush.bf16.msra.mxu0 %v302
        %314 = vmatpush.bf16.msra.mxu0 %v287
        %315 = vmatmul.bf16.gmra.mxu0 %v295
        %v316 = vpop.f32.mrf.mxu0
        %v317 = vadd.f32 0.0, %v316
        %v318 = vpop.f32.mrf.mxu0
        %319 = vdwg.mxu0
        %320 = vmatpush.bf16.msra.mxu0 0
        %321 = vmatpush.bf16.msra.mxu0 0
        %322 = vmatpush.bf16.msra.mxu0 0
        %323 = vmatpush.bf16.msra.mxu0 0
        %324 = vmatpush.bf16.msra.mxu0 0
        %325 = vmatpush.bf16.msra.mxu0 0
        %326 = vmatpush.bf16.msra.mxu0 %v305
        %327 = vmatpush.bf16.msra.mxu0 %v288
        %328 = vmatmul.bf16.gmra.mxu0 %v295
        %v329 = vpop.f32.mrf.mxu0
        %v330 = vadd.f32 0.0, %v329
        %v331 = vpop.f32.mrf.mxu0
        %332 = vdwg.mxu0
        %s333 = scalar_lea.vmem %s241, 32 [#allocation2]
        %v334 = vld [vmem:[%s333] sm:$0xff]
        %v335 = vld [vmem:[%s333 + $0x8] sm:$0xff]
        %v336 = vld [vmem:[%s333 + $0x10] sm:$0xff]
        %v337 = vld [vmem:[%s333 + $0x18] sm:$0x11]
        %v342 = vunpack.c.l.b16 %v334
        %v343 = vunpack.c.h.b16 %v334
        %v344 = vunpack.c.l.b16 %v335
        %v345 = vunpack.c.h.b16 %v335
        %v346 = vunpack.c.l.b16 %v336
        %v347 = vunpack.c.h.b16 %v336
        %v348 = vunpack.c.l.b16 %v337
        %v349 = vunpack.c.h.b16 %v337
        %v350 = vpack.c.b16 %v344, %v342
        %v351 = vpack.c.b16 %v345, %v343
        %v352 = vpack.c.b16 %v348, %v346
        %v353 = vpack.c.b16 %v349, %v347
        %v357 = vand.u32 %v352, %v300
        %v360 = vand.u32 %v353, %v300
        %362 = vmatpush.bf16.msra.mxu0 0
        %363 = vmatpush.bf16.msra.mxu0 0
        %364 = vmatpush.bf16.msra.mxu0 0
        %365 = vmatpush.bf16.msra.mxu0 0
        %366 = vmatpush.bf16.msra.mxu0 0
        %367 = vmatpush.bf16.msra.mxu0 0
        %368 = vmatpush.bf16.msra.mxu0 %v357
        %369 = vmatpush.bf16.msra.mxu0 %v350
        %370 = vmatmul.bf16.gmra.mxu0 %v295
        %v371 = vpop.f32.mrf.mxu0
        %v372 = vadd.f32 0.0, %v371
        %v373 = vpop.f32.mrf.mxu0
        %374 = vdwg.mxu0
        %375 = vmatpush.bf16.msra.mxu0 0
        %376 = vmatpush.bf16.msra.mxu0 0
        %377 = vmatpush.bf16.msra.mxu0 0
        %378 = vmatpush.bf16.msra.mxu0 0
        %379 = vmatpush.bf16.msra.mxu0 0
        %380 = vmatpush.bf16.msra.mxu0 0
        %381 = vmatpush.bf16.msra.mxu0 %v360
        %382 = vmatpush.bf16.msra.mxu0 %v351
        %383 = vmatmul.bf16.gmra.mxu0 %v295
        %v384 = vpop.f32.mrf.mxu0
        %v385 = vadd.f32 0.0, %v384
        %v386 = vpop.f32.mrf.mxu0
        %387 = vdwg.mxu0
        %v388 = vmax.f32 %v317, %v372
        %v389 = vmax.f32 %v330, %v385
        %s390 = scalar_lea.vmem %s241, 64 [#allocation2]
        %v391 = vld [vmem:[%s390] sm:$0xff]
        %v392 = vld [vmem:[%s390 + $0x8] sm:$0xff]
        %v393 = vld [vmem:[%s390 + $0x10] sm:$0xff]
        %v394 = vld [vmem:[%s390 + $0x18] sm:$0x11]
        %v399 = vunpack.c.l.b16 %v391
        %v400 = vunpack.c.h.b16 %v391
        %v401 = vunpack.c.l.b16 %v392
        %v402 = vunpack.c.h.b16 %v392
        %v403 = vunpack.c.l.b16 %v393
        %v404 = vunpack.c.h.b16 %v393
        %v405 = vunpack.c.l.b16 %v394
        %v406 = vunpack.c.h.b16 %v394
        %v407 = vpack.c.b16 %v401, %v399
        %v408 = vpack.c.b16 %v402, %v400
        %v409 = vpack.c.b16 %v405, %v403
        %v410 = vpack.c.b16 %v406, %v404
        %v414 = vand.u32 %v409, %v300
        %v417 = vand.u32 %v410, %v300
        %419 = vmatpush.bf16.msra.mxu0 0
        %420 = vmatpush.bf16.msra.mxu0 0
        %421 = vmatpush.bf16.msra.mxu0 0
        %422 = vmatpush.bf16.msra.mxu0 0
        %423 = vmatpush.bf16.msra.mxu0 0
        %424 = vmatpush.bf16.msra.mxu0 0
        %425 = vmatpush.bf16.msra.mxu0 %v414
        %426 = vmatpush.bf16.msra.mxu0 %v407
        %427 = vmatmul.bf16.gmra.mxu0 %v295
        %v428 = vpop.f32.mrf.mxu0
        %v429 = vadd.f32 0.0, %v428
        %v430 = vpop.f32.mrf.mxu0
        %431 = vdwg.mxu0
        %432 = vmatpush.bf16.msra.mxu0 0
        %433 = vmatpush.bf16.msra.mxu0 0
        %434 = vmatpush.bf16.msra.mxu0 0
        %435 = vmatpush.bf16.msra.mxu0 0
        %436 = vmatpush.bf16.msra.mxu0 0
        %437 = vmatpush.bf16.msra.mxu0 0
        %438 = vmatpush.bf16.msra.mxu0 %v417
        %439 = vmatpush.bf16.msra.mxu0 %v408
        %440 = vmatmul.bf16.gmra.mxu0 %v295
        %v441 = vpop.f32.mrf.mxu0
        %v442 = vadd.f32 0.0, %v441
        %v443 = vpop.f32.mrf.mxu0
        %444 = vdwg.mxu0
        %s445 = scalar_lea.vmem %s241, 96 [#allocation2]
        %v446 = vld [vmem:[%s445] sm:$0xff]
        %v447 = vld [vmem:[%s445 + $0x8] sm:$0xff]
        %v448 = vld [vmem:[%s445 + $0x10] sm:$0xff]
        %v449 = vld [vmem:[%s445 + $0x18] sm:$0x11]
        %v454 = vunpack.c.l.b16 %v446
        %v455 = vunpack.c.h.b16 %v446
        %v456 = vunpack.c.l.b16 %v447
        %v457 = vunpack.c.h.b16 %v447
        %v458 = vunpack.c.l.b16 %v448
        %v459 = vunpack.c.h.b16 %v448
        %v460 = vunpack.c.l.b16 %v449
        %v461 = vunpack.c.h.b16 %v449
        %v462 = vpack.c.b16 %v456, %v454
        %v463 = vpack.c.b16 %v457, %v455
        %v464 = vpack.c.b16 %v460, %v458
        %v465 = vpack.c.b16 %v461, %v459
        %v469 = vand.u32 %v464, %v300
        %v472 = vand.u32 %v465, %v300
        %474 = vmatpush.bf16.msra.mxu0 0
        %475 = vmatpush.bf16.msra.mxu0 0
        %476 = vmatpush.bf16.msra.mxu0 0
        %477 = vmatpush.bf16.msra.mxu0 0
        %478 = vmatpush.bf16.msra.mxu0 0
        %479 = vmatpush.bf16.msra.mxu0 0
        %480 = vmatpush.bf16.msra.mxu0 %v469
        %481 = vmatpush.bf16.msra.mxu0 %v462
        %482 = vmatmul.bf16.gmra.mxu0 %v295
        %v483 = vpop.f32.mrf.mxu0
        %v484 = vadd.f32 0.0, %v483
        %v485 = vpop.f32.mrf.mxu0
        %486 = vdwg.mxu0
        %487 = vmatpush.bf16.msra.mxu0 0
        %488 = vmatpush.bf16.msra.mxu0 0
        %489 = vmatpush.bf16.msra.mxu0 0
        %490 = vmatpush.bf16.msra.mxu0 0
        %491 = vmatpush.bf16.msra.mxu0 0
        %492 = vmatpush.bf16.msra.mxu0 0
        %493 = vmatpush.bf16.msra.mxu0 %v472
        %494 = vmatpush.bf16.msra.mxu0 %v463
        %495 = vmatmul.bf16.gmra.mxu0 %v295
        %v496 = vpop.f32.mrf.mxu0
        %v497 = vadd.f32 0.0, %v496
        %v498 = vpop.f32.mrf.mxu0
        %499 = vdwg.mxu0
        %v500 = vmax.f32 %v429, %v484
        %v501 = vmax.f32 %v442, %v497
        %v502 = vmax.f32 %v388, %v500
        %v503 = vmax.f32 %v389, %v501
        %v504 = vld [vmem:[%s2] sm:$0x3f]
        %506 = vset.pattern.permute.xlu0 0
        %507 = vperm.xlu0 %506, %v504
        %v508 = vpop.permute.xlu0 %507
        %v510 = vadd.f32 %v502, %v508
        %v511 = vadd.f32 %v503, %v508
        %v512 = vtanh.pop %v510
        %v513 = vtanh.pop %v511
        %v514 = vtanh.pop %v512
        %v515 = vtanh.pop %v513
        %516 = vst [vmem:[%s267] sm:$0x3f] %v514
        %517 = vst [vmem:[%s267 + $0x8] sm:$0x3f] %v515
        %s518 = smul.u32 2, %s14
        %p519 = scmp.lt.s32.totalorder %s518, 3
        %s520 = scalar_select %p519, %s518, 3
        %s521 = smul.addr %s520, 8
        %s522 = scalar_lea.vmem %s3, %s521
        // Predicated region
        $region71: #{digit_network_forward.3} parent=65 // pred_check
          %p523 = pneg %p100
        $region72: #{digit_network_forward.3} parent=65 // pred_check_branch
          %525 = sbr.rel (%p523) target = $region74
        $region73: #{digit_network_forward.3} parent=65 // pred_region
          %s526 = smul.u32 2, %s14
        $region74: #{digit_network_forward.3} parent=65 // pred_fallthru
          _
      $region66: #{digit_network_forward.3} parent=5 // pred_fallthru
        _
      %p527 = scmp.le.s32.totalorder 2, %s9
      // Predicated region
      $region75: #{digit_network_forward.3} parent=5 // pred_check
        %p528 = pneg %p527
      $region76: #{digit_network_forward.3} parent=5 // pred_check_branch
        %530 = sbr.rel (%p528) target = $region78
      $region77: #{digit_network_forward.3} parent=5 // pred_region
        %s531 = ssub.s32 %s9, 2
        // Predicated region
        $region79: #{digit_network_forward.3} parent=77 // pred_check
          %p532 = pneg %p106
        $region80: #{digit_network_forward.3} parent=77 // pred_check_branch
          %534 = sbr.rel (%p532) target = $region82
        $region81: #{digit_network_forward.3} parent=77 // pred_region
          %s535 = smul.u32 2, %s15
          %p536 = scmp.lt.s32.totalorder %s535, 3
          %s537 = scalar_select %p536, %s535, 3
          %s538 = smul.addr %s537, 8
          %s539 = scalar_lea.vmem %s3, %s538
        $region82: #{digit_network_forward.3} parent=77 // pred_fallthru
          _
      $region78: #{digit_network_forward.3} parent=5 // pred_fallthru
        _
    $region6: #{digit_network_forward.3} parent=1 // loop_footer
      %s13 = sadd.s32 1, %s9
    $region7: #{digit_network_forward.3} parent=1 // loop_footer_branch
      %8 = sbr.rel target = $region3
    $region8: #{digit_network_forward.3} parent=1 // loop_exit
      _

// kernel: digit_network_forward.5
$region0: #{digit_network_forward.5}
  #allocation0 [shape = 'u32[]', space=smem, size = 0x4, offset = 0x4, fixed_abs, tag = 'smem constant byte address 0x4 - core index']
  #allocation1 [shape = 'u32[72,128]{1,0:T(1,128)}', space=vmem, size = 0x9000, scoped, tag = 'internal scratch']
  %s0 = inlined_call_operand.vmem [shape: f32[8,256], index: 0, kind: input, shape index: {}]
  %s1 = inlined_call_operand.vmem [shape: f32[256,128], index: 1, kind: input, shape index: {}]
  %s2 = inlined_call_operand.vmem [shape: f32[1,128], index: 2, kind: input, shape index: {}]
  %s3 = inlined_call_operand.vmem [shape: f32[128,10], index: 3, kind: input, shape index: {}]
  %s4 = inlined_call_operand.vmem [shape: f32[1,10], index: 4, kind: input, shape index: {}]
  %s5 = inlined_call_operand.vmem [shape: f32[8,10], index: 5, kind: output, shape index: {}]
  %s6 = sld [smem:[#allocation0]]
  $region30: #{digit_network_forward.5} parent=0
    _
  %s8 = ssub.s32 1, %s6
  %s9 = scalar_select 0, %s8, %s6
  // Predicated region
  $region2: #{digit_network_forward.5} parent=0 // pred_check
    _
  $region3: #{digit_network_forward.5} parent=0 // pred_check_branch
    %11 = sbr.rel (0) target = $region5
  $region4: #{digit_network_forward.5} parent=0 // pred_region
    _
  $region5: #{digit_network_forward.5} parent=0 // pred_fallthru
    _
  // Predicated region
  $region6: #{digit_network_forward.5} parent=0 // pred_check
    _
  $region7: #{digit_network_forward.5} parent=0 // pred_check_branch
    %13 = sbr.rel (0) target = $region9
  $region8: #{digit_network_forward.5} parent=0 // pred_region
    _
  $region9: #{digit_network_forward.5} parent=0 // pred_fallthru
    _
  // Predicated region
  $region10: #{digit_network_forward.5} parent=0 // pred_check
    _
  $region11: #{digit_network_forward.5} parent=0 // pred_check_branch
    %15 = sbr.rel (0) target = $region13
  $region12: #{digit_network_forward.5} parent=0 // pred_region
    _
  $region13: #{digit_network_forward.5} parent=0 // pred_fallthru
    _
  // Predicated region
  $region14: #{digit_network_forward.5} parent=0 // pred_check
    _
  $region15: #{digit_network_forward.5} parent=0 // pred_check_branch
    %17 = sbr.rel (0) target = $region17
  $region16: #{digit_network_forward.5} parent=0 // pred_region
    _
  $region17: #{digit_network_forward.5} parent=0 // pred_fallthru
    _
  // Predicated region
  $region18: #{digit_network_forward.5} parent=0 // pred_check
    _
  $region19: #{digit_network_forward.5} parent=0 // pred_check_branch
    %19 = sbr.rel (0) target = $region21
  $region20: #{digit_network_forward.5} parent=0 // pred_region
    _
  $region21: #{digit_network_forward.5} parent=0 // pred_fallthru
    _
  %v20 = vld [vmem:[%s0] sm:$0xff]
  %v21 = vld [vmem:[%s0 + $0x8] sm:$0xff]
  %v22 = vtanh.pop %v20
  %v23 = vtanh.pop %v21
  %v24 = vld [vmem:[%s1] sm:$0xff]
  %v25 = vld [vmem:[%s1 + $0x8] sm:$0xff]
  %v26 = vld [vmem:[%s1 + $0x10] sm:$0xff]
  %v27 = vld [vmem:[%s1 + $0x18] sm:$0xff]
  %v28 = vld [vmem:[%s1 + $0x20] sm:$0xff]
  %v29 = vld [vmem:[%s1 + $0x28] sm:$0xff]
  %v30 = vld [vmem:[%s1 + $0x30] sm:$0xff]
  %v31 = vld [vmem:[%s1 + $0x38] sm:$0xff]
  %v32 = vld [vmem:[%s1 + $0x40] sm:$0xff]
  %v33 = vld [vmem:[%s1 + $0x48] sm:$0xff]
  %v34 = vld [vmem:[%s1 + $0x50] sm:$0xff]
  %v35 = vld [vmem:[%s1 + $0x58] sm:$0xff]
  %v36 = vld [vmem:[%s1 + $0x60] sm:$0xff]
  %v37 = vld [vmem:[%s1 + $0x68] sm:$0xff]
  %v38 = vld [vmem:[%s1 + $0x70] sm:$0xff]
  %v39 = vld [vmem:[%s1 + $0x78] sm:$0xff]
  %v40 = vld [vmem:[%s1 + $0x80] sm:$0xff]
  %v41 = vld [vmem:[%s1 + $0x88] sm:$0xff]
  %v42 = vld [vmem:[%s1 + $0x90] sm:$0xff]
  %v43 = vld [vmem:[%s1 + $0x98] sm:$0xff]
  %v44 = vld [vmem:[%s1 + $0xa0] sm:$0xff]
  %v45 = vld [vmem:[%s1 + $0xa8] sm:$0xff]
  %v46 = vld [vmem:[%s1 + $0xb0] sm:$0xff]
  %v47 = vld [vmem:[%s1 + $0xb8] sm:$0xff]
  %v48 = vld [vmem:[%s1 + $0xc0] sm:$0xff]
  %v49 = vld [vmem:[%s1 + $0xc8] sm:$0xff]
  %v50 = vld [vmem:[%s1 + $0xd0] sm:$0xff]
  %v51 = vld [vmem:[%s1 + $0xd8] sm:$0xff]
  %v52 = vld [vmem:[%s1 + $0xe0] sm:$0xff]
  %v53 = vld [vmem:[%s1 + $0xe8] sm:$0xff]
  %v54 = vld [vmem:[%s1 + $0xf0] sm:$0xff]
  %v55 = vld [vmem:[%s1 + $0xf8] sm:$0xff]
  %v56 = vld [vmem:[%s2] sm:$0x1]
  %v58 = vperm.slane %v56, 0
  %60 = vmatpush.msra.mxu0 %v39
  %61 = vmatpush.msra.mxu0 %v38
  %62 = vmatpush.msra.mxu0 %v37
  %63 = vmatpush.msra.mxu0 %v36
  %64 = vmatpush.msra.mxu0 %v35
  %65 = vmatpush.msra.mxu0 %v34
  %66 = vmatpush.msra.mxu0 %v33
  %67 = vmatpush.msra.mxu0 %v32
  %68 = vmatpush.msra.mxu0 %v31
  %69 = vmatpush.msra.mxu0 %v30
  %70 = vmatpush.msra.mxu0 %v29
  %71 = vmatpush.msra.mxu0 %v28
  %72 = vmatpush.msra.mxu0 %v27
  %73 = vmatpush.msra.mxu0 %v26
  %74 = vmatpush.msra.mxu0 %v25
  %75 = vmatpush.msra.mxu0 %v24
  %76 = vmatmul.f32.gmra.mxu0 %v22
  %v77 = vpop.f32.mrf.mxu0
  %v78 = vadd.f32 %v58, %v77
  %79 = vdwg.mxu0
  %80 = vmatpush.msra.mxu0 %v55
  %81 = vmatpush.msra.mxu0 %v54
  %82 = vmatpush.msra.mxu0 %v53
  %83 = vmatpush.msra.mxu0 %v52
  %84 = vmatpush.msra.mxu0 %v51
  %85 = vmatpush.msra.mxu0 %v50
  %86 = vmatpush.msra.mxu0 %v49
  %87 = vmatpush.msra.mxu0 %v48
  %88 = vmatpush.msra.mxu0 %v47
  %89 = vmatpush.msra.mxu0 %v46
  %90 = vmatpush.msra.mxu0 %v45
  %91 = vmatpush.msra.mxu0 %v44
  %92 = vmatpush.msra.mxu0 %v43
  %93 = vmatpush.msra.mxu0 %v42
  %94 = vmatpush.msra.mxu0 %v41
  %95 = vmatpush.msra.mxu0 %v40
  %96 = vmatmul.f32.gmra.mxu0 %v23
  %v97 = vpop.f32.mrf.mxu0
  %v98 = vadd.f32 %v78, %v97
  %99 = vdwg.mxu0
  %v100 = vtanh.pop %v98
  %v101 = vld [vmem:[%s3] sm:$0xff]
  %v102 = vld [vmem:[%s3 + $0x8] sm:$0xff]
  %v103 = vld [vmem:[%s3 + $0x10] sm:$0xff]
  %v104 = vld [vmem:[%s3 + $0x18] sm:$0xff]
  %v105 = vld [vmem:[%s3 + $0x20] sm:$0xff]
  %v106 = vld [vmem:[%s3 + $0x28] sm:$0xff]
  %v107 = vld [vmem:[%s3 + $0x30] sm:$0xff]
  %v108 = vld [vmem:[%s3 + $0x38] sm:$0xff]
  %v109 = vld [vmem:[%s3 + $0x40] sm:$0xff]
  %v110 = vld [vmem:[%s3 + $0x48] sm:$0xff]
  %v111 = vld [vmem:[%s3 + $0x50] sm:$0xff]
  %v112 = vld [vmem:[%s3 + $0x58] sm:$0xff]
  %v113 = vld [vmem:[%s3 + $0x60] sm:$0xff]
  %v114 = vld [vmem:[%s3 + $0x68] sm:$0xff]
  %v115 = vld [vmem:[%s3 + $0x70] sm:$0xff]
  %v116 = vld [vmem:[%s3 + $0x78] sm:$0xff]
  %v117 = vld [vmem:[%s4] sm:$0x1]
  %v119 = vperm.slane %v117, 0
  %121 = vmatpush.msra.mxu0 %v116
  %122 = vmatpush.msra.mxu0 %v115
  %123 = vmatpush.msra.mxu0 %v114
  %124 = vmatpush.msra.mxu0 %v113
  %125 = vmatpush.msra.mxu0 %v112
  %126 = vmatpush.msra.mxu0 %v111
  %127 = vmatpush.msra.mxu0 %v110
  %128 = vmatpush.msra.mxu0 %v109
  %129 = vmatpush.msra.mxu0 %v108
  %130 = vmatpush.msra.mxu0 %v107
  %131 = vmatpush.msra.mxu0 %v106
  %132 = vmatpush.msra.mxu0 %v105
  %133 = vmatpush.msra.mxu0 %v104
  %134 = vmatpush.msra.mxu0 %v103
  %135 = vmatpush.msra.mxu0 %v102
  %136 = vmatpush.msra.mxu0 %v101
  %137 = vmatmul.f32.gmra.mxu0 %v100
  %v138 = vpop.f32.mrf.mxu0
  %v139 = vadd.f32 %v119, %v138
  %140 = vdwg.mxu0
  %vm141 = vcmask 80896
  %142 = vst.msk [vmem:[%s5] sm:$0xff] %vm141, %v139
  // Predicated region
  $region22: #{digit_network_forward.5} parent=0 // pred_check
    _
  $region23: #{digit_network_forward.5} parent=0 // pred_check_branch
    %144 = sbr.rel (0) target = $region25
  $region24: #{digit_network_forward.5} parent=0 // pred_region
    _
  $region25: #{digit_network_forward.5} parent=0 // pred_fallthru
    _
  // Predicated region
  $region26: #{digit_network_forward.5} parent=0 // pred_check
    _
  $region27: #{digit_network_forward.5} parent=0 // pred_check_branch
    %146 = sbr.rel (0) target = $region29
  $region28: #{digit_network_forward.5} parent=0 // pred_region
    _
  $region29: #{digit_network_forward.5} parent=0 // pred_fallthru
    _

// kernel: digit_network_forward.4
$region0: #{digit_network_forward.4}
  #allocation0 [shape = 'u32[]', space=smem, size = 0x4, offset = 0x4, fixed_abs, tag = 'smem constant byte address 0x4 - core index']
  #allocation1 [shape = 'u32[72,128]{1,0:T(1,128)}', space=vmem, size = 0x9000, scoped, tag = 'internal scratch']
  %s0 = inlined_call_operand.vmem [shape: bf16[4,150,128], index: 0, kind: input, shape index: {}]
  %s1 = inlined_call_operand.vmem [shape: bf16[16,150], index: 1, kind: input, shape index: {}]
  %s2 = inlined_call_operand.vmem [shape: f32[16,1], index: 2, kind: input, shape index: {}]
  %s3 = inlined_call_operand.vmem [shape: f32[16,128], index: 3, kind: output, shape index: {}]
  %s4 = sld [smem:[#allocation0]]
  $region22: #{digit_network_forward.4} parent=0
    _
  %s6 = ssub.s32 1, %s4
  %s7 = scalar_select 0, %s6, %s4
  // Predicated region
  $region2: #{digit_network_forward.4} parent=0 // pred_check
    _
  $region3: #{digit_network_forward.4} parent=0 // pred_check_branch
    %9 = sbr.rel (0) target = $region5
  $region4: #{digit_network_forward.4} parent=0 // pred_region
    _
  $region5: #{digit_network_forward.4} parent=0 // pred_fallthru
    _
  // Predicated region
  $region6: #{digit_network_forward.4} parent=0 // pred_check
    _
  $region7: #{digit_network_forward.4} parent=0 // pred_check_branch
    %11 = sbr.rel (0) target = $region9
  $region8: #{digit_network_forward.4} parent=0 // pred_region
    _
  $region9: #{digit_network_forward.4} parent=0 // pred_fallthru
    _
  // Predicated region
  $region10: #{digit_network_forward.4} parent=0 // pred_check
    _
  $region11: #{digit_network_forward.4} parent=0 // pred_check_branch
    %13 = sbr.rel (0) target = $region13
  $region12: #{digit_network_forward.4} parent=0 // pred_region
    _
  $region13: #{digit_network_forward.4} parent=0 // pred_fallthru
    _
  %v15 = vld [vmem:[%s1] sm:$0xff]
  %v16 = vld [vmem:[%s1 + $0x8] sm:$0xff]
  %v17 = vld [vmem:[%s0] sm:$0xf]
  %v18 = vld [vmem:[%s0 + $0x4] sm:$0xf]
  %v19 = vld [vmem:[%s0 + $0x8] sm:$0xf]
  %v20 = vld [vmem:[%s0 + $0xc] sm:$0xf]
  %v21 = vld [vmem:[%s0 + $0x10] sm:$0xf]
  %v22 = vld [vmem:[%s0 + $0x14] sm:$0xf]
  %v23 = vld [vmem:[%s0 + $0x18] sm:$0xf]
  %v24 = vld [vmem:[%s0 + $0x1c] sm:$0xf]
  %v25 = vld [vmem:[%s0 + $0x20] sm:$0xf]
  %v26 = vld [vmem:[%s0 + $0x24] sm:$0xf]
  %v27 = vld [vmem:[%s0 + $0x28] sm:$0xf]
  %v28 = vld [vmem:[%s0 + $0x2c] sm:$0xf]
  %v29 = vld [vmem:[%s0 + $0x30] sm:$0xf]
  %v30 = vld [vmem:[%s0 + $0x34] sm:$0xf]
  %v31 = vld [vmem:[%s0 + $0x38] sm:$0xf]
  %v32 = vld [vmem:[%s0 + $0x3c] sm:$0xf]
  %v33 = vld [vmem:[%s0 + $0x40] sm:$0xf]
  %v34 = vld [vmem:[%s0 + $0x44] sm:$0xf]
  %v35 = vld [vmem:[%s0 + $0x48] sm:$0x7]
  %v38 = vunpack.c.l.b16 %v15
  %v39 = vunpack.c.h.b16 %v15
  %v40 = vunpack.c.l.b16 %v16
  %v41 = vunpack.c.h.b16 %v16
  %v42 = vpack.c.b16 %v40, %v38
  %v43 = vpack.c.b16 %v41, %v39
  %v64 = vunpack.c.l.b16 %v17
  %v65 = vunpack.c.l.b16 %v18
  %v66 = vunpack.c.l.b16 %v19
  %v67 = vunpack.c.l.b16 %v20
  %v68 = vunpack.c.l.b16 %v21
  %v69 = vunpack.c.l.b16 %v22
  %v70 = vunpack.c.l.b16 %v23
  %v71 = vunpack.c.l.b16 %v24
  %v72 = vunpack.c.l.b16 %v25
  %v73 = vunpack.c.l.b16 %v26
  %v74 = vunpack.c.l.b16 %v27
  %v75 = vunpack.c.l.b16 %v28
  %v76 = vunpack.c.l.b16 %v29
  %v77 = vunpack.c.l.b16 %v30
  %v78 = vunpack.c.l.b16 %v31
  %v79 = vunpack.c.l.b16 %v32
  %v80 = vunpack.c.l.b16 %v33
  %v81 = vunpack.c.l.b16 %v34
  %v82 = vunpack.c.l.b16 %v35
  %v83 = vpack.c.b16 %v65, %v64
  %v84 = vpack.c.b16 %v67, %v66
  %v85 = vpack.c.b16 %v69, %v68
  %v86 = vpack.c.b16 %v71, %v70
  %v87 = vpack.c.b16 %v73, %v72
  %v88 = vpack.c.b16 %v75, %v74
  %v89 = vpack.c.b16 %v77, %v76
  %v90 = vpack.c.b16 %v79, %v78
  %v91 = vpack.c.b16 %v81, %v80
  %v92 = vpack.c.b16 %v82, %v82
  %vm102 = vcmask 179200
  %v104 = vsel %vm102, %v43, 0
  %vm106 = vcmask 1042432
  %v108 = vsel %vm106, %v92, 0
  %110 = vmatpush.bf16.msra.mxu0 %v90
  %111 = vmatpush.bf16.msra.mxu0 %v89
  %112 = vmatpush.bf16.msra.mxu0 %v88
  %113 = vmatpush.bf16.msra.mxu0 %v87
  %114 = vmatpush.bf16.msra.mxu0 %v86
  %115 = vmatpush.bf16.msra.mxu0 %v85
  %116 = vmatpush.bf16.msra.mxu0 %v84
  %117 = vmatpush.bf16.msra.mxu0 %v83
  %118 = vmatmul.bf16.gmra.mxu0 %v42
  %v119 = vpop.f32.mrf.mxu0
  %v120 = vadd.f32 0.0, %v119
  %v121 = vpop.f32.mrf.mxu0
  %v122 = vadd.f32 0.0, %v121
  %123 = vdwg.mxu0
  %124 = vmatpush.bf16.msra.mxu0 0
  %125 = vmatpush.bf16.msra.mxu0 0
  %126 = vmatpush.bf16.msra.mxu0 0
  %127 = vmatpush.bf16.msra.mxu0 0
  %128 = vmatpush.bf16.msra.mxu0 0
  %129 = vmatpush.bf16.msra.mxu0 0
  %130 = vmatpush.bf16.msra.mxu0 %v108
  %131 = vmatpush.bf16.msra.mxu0 %v91
  %132 = vmatmul.bf16.gmra.mxu0 %v104
  %v133 = vpop.f32.mrf.mxu0
  %v134 = vadd.f32 %v120, %v133
  %v135 = vpop.f32.mrf.mxu0
  %v136 = vadd.f32 %v122, %v135
  %137 = vdwg.mxu0
  %s138 = scalar_lea.vmem %s0, 76
  %v139 = vld [vmem:[%s138] sm:$0xf]
  %v140 = vld [vmem:[%s138 + $0x4] sm:$0xf]
  %v141 = vld [vmem:[%s138 + $0x8] sm:$0xf]
  %v142 = vld [vmem:[%s138 + $0xc] sm:$0xf]
  %v143 = vld [vmem:[%s138 + $0x10] sm:$0xf]
  %v144 = vld [vmem:[%s138 + $0x14] sm:$0xf]
  %v145 = vld [vmem:[%s138 + $0x18] sm:$0xf]
  %v146 = vld [vmem:[%s138 + $0x1c] sm:$0xf]
  %v147 = vld [vmem:[%s138 + $0x20] sm:$0xf]
  %v148 = vld [vmem:[%s138 + $0x24] sm:$0xf]
  %v149 = vld [vmem:[%s138 + $0x28] sm:$0xf]
  %v150 = vld [vmem:[%s138 + $0x2c] sm:$0xf]
  %v151 = vld [vmem:[%s138 + $0x30] sm:$0xf]
  %v152 = vld [vmem:[%s138 + $0x34] sm:$0xf]
  %v153 = vld [vmem:[%s138 + $0x38] sm:$0xf]
  %v154 = vld [vmem:[%s138 + $0x3c] sm:$0xf]
  %v155 = vld [vmem:[%s138 + $0x40] sm:$0xf]
  %v156 = vld [vmem:[%s138 + $0x44] sm:$0xf]
  %v157 = vld [vmem:[%s138 + $0x48] sm:$0x7]
  %v177 = vunpack.c.l.b16 %v139
  %v178 = vunpack.c.l.b16 %v140
  %v179 = vunpack.c.l.b16 %v141
  %v180 = vunpack.c.l.b16 %v142
  %v181 = vunpack.c.l.b16 %v143
  %v182 = vunpack.c.l.b16 %v144
  %v183 = vunpack.c.l.b16 %v145
  %v184 = vunpack.c.l.b16 %v146
  %v185 = vunpack.c.l.b16 %v147
  %v186 = vunpack.c.l.b16 %v148
  %v187 = vunpack.c.l.b16 %v149
  %v188 = vunpack.c.l.b16 %v150
  %v189 = vunpack.c.l.b16 %v151
  %v190 = vunpack.c.l.b16 %v152
  %v191 = vunpack.c.l.b16 %v153
  %v192 = vunpack.c.l.b16 %v154
  %v193 = vunpack.c.l.b16 %v155
  %v194 = vunpack.c.l.b16 %v156
  %v195 = vunpack.c.l.b16 %v157
  %v196 = vpack.c.b16 %v178, %v177
  %v197 = vpack.c.b16 %v180, %v179
  %v198 = vpack.c.b16 %v182, %v181
  %v199 = vpack.c.b16 %v184, %v183
  %v200 = vpack.c.b16 %v186, %v185
  %v201 = vpack.c.b16 %v188, %v187
  %v202 = vpack.c.b16 %v190, %v189
  %v203 = vpack.c.b16 %v192, %v191
  %v204 = vpack.c.b16 %v194, %v193
  %v205 = vpack.c.b16 %v195, %v195
  %v216 = vsel %vm106, %v205, 0
  %218 = vmatpush.bf16.msra.mxu0 %v203
  %219 = vmatpush.bf16.msra.mxu0 %v202
  %220 = vmatpush.bf16.msra.mxu0 %v201
  %221 = vmatpush.bf16.msra.mxu0 %v200
  %222 = vmatpush.bf16.msra.mxu0 %v199
  %223 = vmatpush.bf16.msra.mxu0 %v198
  %224 = vmatpush.bf16.msra.mxu0 %v197
  %225 = vmatpush.bf16.msra.mxu0 %v196
  %226 = vmatmul.bf16.gmra.mxu0 %v42
  %v227 = vpop.f32.mrf.mxu0
  %v228 = vadd.f32 0.0, %v227
  %v229 = vpop.f32.mrf.mxu0
  %v230 = vadd.f32 0.0, %v229
  %231 = vdwg.mxu0
  %232 = vmatpush.bf16.msra.mxu0 0
  %233 = vmatpush.bf16.msra.mxu0 0
  %234 = vmatpush.bf16.msra.mxu0 0
  %235 = vmatpush.bf16.msra.mxu0 0
  %236 = vmatpush.bf16.msra.mxu0 0
  %237 = vmatpush.bf16.msra.mxu0 0
  %238 = vmatpush.bf16.msra.mxu0 %v216
  %239 = vmatpush.bf16.msra.mxu0 %v204
  %240 = vmatmul.bf16.gmra.mxu0 %v104
  %v241 = vpop.f32.mrf.mxu0
  %v242 = vadd.f32 %v228, %v241
  %v243 = vpop.f32.mrf.mxu0
  %v244 = vadd.f32 %v230, %v243
  %245 = vdwg.mxu0
  %v246 = vmax.f32 %v134, %v242
  %v247 = vmax.f32 %v136, %v244
  %s248 = scalar_lea.vmem %s0, 152
  %v249 = vld [vmem:[%s248] sm:$0xf]
  %v250 = vld [vmem:[%s248 + $0x4] sm:$0xf]
  %v251 = vld [vmem:[%s248 + $0x8] sm:$0xf]
  %v252 = vld [vmem:[%s248 + $0xc] sm:$0xf]
  %v253 = vld [vmem:[%s248 + $0x10] sm:$0xf]
  %v254 = vld [vmem:[%s248 + $0x14] sm:$0xf]
  %v255 = vld [vmem:[%s248 + $0x18] sm:$0xf]
  %v256 = vld [vmem:[%s248 + $0x1c] sm:$0xf]
  %v257 = vld [vmem:[%s248 + $0x20] sm:$0xf]
  %v258 = vld [vmem:[%s248 + $0x24] sm:$0xf]
  %v259 = vld [vmem:[%s248 + $0x28] sm:$0xf]
  %v260 = vld [vmem:[%s248 + $0x2c] sm:$0xf]
  %v261 = vld [vmem:[%s248 + $0x30] sm:$0xf]
  %v262 = vld [vmem:[%s248 + $0x34] sm:$0xf]
  %v263 = vld [vmem:[%s248 + $0x38] sm:$0xf]
  %v264 = vld [vmem:[%s248 + $0x3c] sm:$0xf]
  %v265 = vld [vmem:[%s248 + $0x40] sm:$0xf]
  %v266 = vld [vmem:[%s248 + $0x44] sm:$0xf]
  %v267 = vld [vmem:[%s248 + $0x48] sm:$0x7]
  %v287 = vunpack.c.l.b16 %v249
  %v288 = vunpack.c.l.b16 %v250
  %v289 = vunpack.c.l.b16 %v251
  %v290 = vunpack.c.l.b16 %v252
  %v291 = vunpack.c.l.b16 %v253
  %v292 = vunpack.c.l.b16 %v254
  %v293 = vunpack.c.l.b16 %v255
  %v294 = vunpack.c.l.b16 %v256
  %v295 = vunpack.c.l.b16 %v257
  %v296 = vunpack.c.l.b16 %v258
  %v297 = vunpack.c.l.b16 %v259
  %v298 = vunpack.c.l.b16 %v260
  %v299 = vunpack.c.l.b16 %v261
  %v300 = vunpack.c.l.b16 %v262
  %v301 = vunpack.c.l.b16 %v263
  %v302 = vunpack.c.l.b16 %v264
  %v303 = vunpack.c.l.b16 %v265
  %v304 = vunpack.c.l.b16 %v266
  %v305 = vunpack.c.l.b16 %v267
  %v306 = vpack.c.b16 %v288, %v287
  %v307 = vpack.c.b16 %v290, %v289
  %v308 = vpack.c.b16 %v292, %v291
  %v309 = vpack.c.b16 %v294, %v293
  %v310 = vpack.c.b16 %v296, %v295
  %v311 = vpack.c.b16 %v298, %v297
  %v312 = vpack.c.b16 %v300, %v299
  %v313 = vpack.c.b16 %v302, %v301
  %v314 = vpack.c.b16 %v304, %v303
  %v315 = vpack.c.b16 %v305, %v305
  %v326 = vsel %vm106, %v315, 0
  %328 = vmatpush.bf16.msra.mxu0 %v313
  %329 = vmatpush.bf16.msra.mxu0 %v312
  %330 = vmatpush.bf16.msra.mxu0 %v311
  %331 = vmatpush.bf16.msra.mxu0 %v310
  %332 = vmatpush.bf16.msra.mxu0 %v309
  %333 = vmatpush.bf16.msra.mxu0 %v308
  %334 = vmatpush.bf16.msra.mxu0 %v307
  %335 = vmatpush.bf16.msra.mxu0 %v306
  %336 = vmatmul.bf16.gmra.mxu0 %v42
  %v337 = vpop.f32.mrf.mxu0
  %v338 = vadd.f32 0.0, %v337
  %v339 = vpop.f32.mrf.mxu0
  %v340 = vadd.f32 0.0, %v339
  %341 = vdwg.mxu0
  %342 = vmatpush.bf16.msra.mxu0 0
  %343 = vmatpush.bf16.msra.mxu0 0
  %344 = vmatpush.bf16.msra.mxu0 0
  %345 = vmatpush.bf16.msra.mxu0 0
  %346 = vmatpush.bf16.msra.mxu0 0
  %347 = vmatpush.bf16.msra.mxu0 0
  %348 = vmatpush.bf16.msra.mxu0 %v326
  %349 = vmatpush.bf16.msra.mxu0 %v314
  %350 = vmatmul.bf16.gmra.mxu0 %v104
  %v351 = vpop.f32.mrf.mxu0
  %v352 = vadd.f32 %v338, %v351
  %v353 = vpop.f32.mrf.mxu0
  %v354 = vadd.f32 %v340, %v353
  %355 = vdwg.mxu0
  %s356 = scalar_lea.vmem %s0, 228
  %v357 = vld [vmem:[%s356] sm:$0xf]
  %v358 = vld [vmem:[%s356 + $0x4] sm:$0xf]
  %v359 = vld [vmem:[%s356 + $0x8] sm:$0xf]
  %v360 = vld [vmem:[%s356 + $0xc] sm:$0xf]
  %v361 = vld [vmem:[%s356 + $0x10] sm:$0xf]
  %v362 = vld [vmem:[%s356 + $0x14] sm:$0xf]
  %v363 = vld [vmem:[%s356 + $0x18] sm:$0xf]
  %v364 = vld [vmem:[%s356 + $0x1c] sm:$0xf]
  %v365 = vld [vmem:[%s356 + $0x20] sm:$0xf]
  %v366 = vld [vmem:[%s356 + $0x24] sm:$0xf]
  %v367 = vld [vmem:[%s356 + $0x28] sm:$0xf]
  %v368 = vld [vmem:[%s356 + $0x2c] sm:$0xf]
  %v369 = vld [vmem:[%s356 + $0x30] sm:$0xf]
  %v370 = vld [vmem:[%s356 + $0x34] sm:$0xf]
  %v371 = vld [vmem:[%s356 + $0x38] sm:$0xf]
  %v372 = vld [vmem:[%s356 + $0x3c] sm:$0xf]
  %v373 = vld [vmem:[%s356 + $0x40] sm:$0xf]
  %v374 = vld [vmem:[%s356 + $0x44] sm:$0xf]
  %v375 = vld [vmem:[%s356 + $0x48] sm:$0x7]
  %v395 = vunpack.c.l.b16 %v357
  %v396 = vunpack.c.l.b16 %v358
  %v397 = vunpack.c.l.b16 %v359
  %v398 = vunpack.c.l.b16 %v360
  %v399 = vunpack.c.l.b16 %v361
  %v400 = vunpack.c.l.b16 %v362
  %v401 = vunpack.c.l.b16 %v363
  %v402 = vunpack.c.l.b16 %v364
  %v403 = vunpack.c.l.b16 %v365
  %v404 = vunpack.c.l.b16 %v366
  %v405 = vunpack.c.l.b16 %v367
  %v406 = vunpack.c.l.b16 %v368
  %v407 = vunpack.c.l.b16 %v369
  %v408 = vunpack.c.l.b16 %v370
  %v409 = vunpack.c.l.b16 %v371
  %v410 = vunpack.c.l.b16 %v372
  %v411 = vunpack.c.l.b16 %v373
  %v412 = vunpack.c.l.b16 %v374
  %v413 = vunpack.c.l.b16 %v375
  %v414 = vpack.c.b16 %v396, %v395
  %v415 = vpack.c.b16 %v398, %v397
  %v416 = vpack.c.b16 %v400, %v399
  %v417 = vpack.c.b16 %v402, %v401
  %v418 = vpack.c.b16 %v404, %v403
  %v419 = vpack.c.b16 %v406, %v405
  %v420 = vpack.c.b16 %v408, %v407
  %v421 = vpack.c.b16 %v410, %v409
  %v422 = vpack.c.b16 %v412, %v411
  %v423 = vpack.c.b16 %v413, %v413
  %v434 = vsel %vm106, %v423, 0
  %436 = vmatpush.bf16.msra.mxu0 %v421
  %437 = vmatpush.bf16.msra.mxu0 %v420
  %438 = vmatpush.bf16.msra.mxu0 %v419
  %439 = vmatpush.bf16.msra.mxu0 %v418
  %440 = vmatpush.bf16.msra.mxu0 %v417
  %441 = vmatpush.bf16.msra.mxu0 %v416
  %442 = vmatpush.bf16.msra.mxu0 %v415
  %443 = vmatpush.bf16.msra.mxu0 %v414
  %444 = vmatmul.bf16.gmra.mxu0 %v42
  %v445 = vpop.f32.mrf.mxu0
  %v446 = vadd.f32 0.0, %v445
  %v447 = vpop.f32.mrf.mxu0
  %v448 = vadd.f32 0.0, %v447
  %449 = vdwg.mxu0
  %450 = vmatpush.bf16.msra.mxu0 0
  %451 = vmatpush.bf16.msra.mxu0 0
  %452 = vmatpush.bf16.msra.mxu0 0
  %453 = vmatpush.bf16.msra.mxu0 0
  %454 = vmatpush.bf16.msra.mxu0 0
  %455 = vmatpush.bf16.msra.mxu0 0
  %456 = vmatpush.bf16.msra.mxu0 %v434
  %457 = vmatpush.bf16.msra.mxu0 %v422
  %458 = vmatmul.bf16.gmra.mxu0 %v104
  %v459 = vpop.f32.mrf.mxu0
  %v460 = vadd.f32 %v446, %v459
  %v461 = vpop.f32.mrf.mxu0
  %v462 = vadd.f32 %v448, %v461
  %463 = vdwg.mxu0
  %v464 = vmax.f32 %v352, %v460
  %v465 = vmax.f32 %v354, %v462
  %v466 = vmax.f32 %v246, %v464
  %v467 = vmax.f32 %v247, %v465
  %v468 = vld [vmem:[%s2] sm:$0xff]
  %v469 = vld [vmem:[%s2 + $0x8] sm:$0xff]
  %471 = vset.pattern.permute.xlu0 0
  %472 = vperm.xlu0 %471, %v468
  %v473 = vpop.permute.xlu0 %472
  %476 = vset.pattern.permute.xlu0 0
  %477 = vperm.xlu0 %476, %v469
  %v478 = vpop.permute.xlu0 %477
  %v480 = vadd.f32 %v466, %v473
  %v481 = vadd.f32 %v467, %v478
  %v482 = vtanh.pop %v480
  %v483 = vtanh.pop %v481
  %v484 = vtanh.pop %v482
  %v485 = vtanh.pop %v483
  %486 = vst [vmem:[%s3] sm:$0xff] %v484
  %487 = vst [vmem:[%s3 + $0x8] sm:$0xff] %v485
  // Predicated region
  $region14: #{digit_network_forward.4} parent=0 // pred_check
    _
  $region15: #{digit_network_forward.4} parent=0 // pred_check_branch
    %489 = sbr.rel (0) target = $region17
  $region16: #{digit_network_forward.4} parent=0 // pred_region
    _
  $region17: #{digit_network_forward.4} parent=0 // pred_fallthru
    _
  // Predicated region
  $region18: #{digit_network_forward.4} parent=0 // pred_check
    _
  $region19: #{digit_network_forward.4} parent=0 // pred_check_branch
    %491 = sbr.rel (0) target = $region21
  $region20: #{digit_network_forward.4} parent=0 // pred_region
    _
  $region21: #{digit_network_forward.4} parent=0 // pred_fallthru
    _

</llo_original>
